<compile_context>
chip_gen: v7x
topology: tpu7x:2x2x1
jax: 0.10.0
libtpu: 0.0.40
codegen_flags: <defaults>
</compile_context>

<pallas_src>
import functools

import jax
import jax.numpy as jnp
from jax.experimental import pallas as pl
from jax.experimental.pallas import tpu as pltpu


def _layernorm_kernel(x_ref, w_ref, b_ref, o_ref, *, eps, d_model):
    # x_ref: (block_rows, D); w_ref/b_ref: (1, D) f32, resident across the grid.
    xf = x_ref[...].astype(jnp.float32)
    # Single fused pass: sum and sum-of-squares together.
    s1 = jnp.sum(xf, axis=-1, keepdims=True)
    s2 = jnp.sum(xf * xf, axis=-1, keepdims=True)
    inv_d = 1.0 / float(d_model)
    mean = s1 * inv_d
    # unbiased=False -> population variance; clamp against f32 cancellation.
    var = jnp.maximum(s2 * inv_d - mean * mean, 0.0)
    inv_std = jax.lax.rsqrt(var + eps)            # EUP slot, ~free
    y = (xf - mean) * inv_std
    o_ref[...] = (y * w_ref[...] + b_ref[...]).astype(o_ref.dtype)


def _sublane_multiple(dtype) -> int:
    # Sub-32-bit dtypes pack along sublanes: bf16 wants 16-row tiles,
    # int8/fp8 want 32-row tiles for fully packed vld/vst.
    itemsize = jnp.dtype(dtype).itemsize
    return max(8, 8 * (4 // max(1, itemsize)))


def _vmem_cap_bytes() -> int:
    """Generation-aware scoped-VMEM cap (leaves headroom under physical)."""
    physical = 128 << 20
    try:
        info = pltpu.get_tpu_info()
        physical = int(getattr(info, "vmem_capacity_bytes", physical))
    except Exception:
        pass
    # ~44 MiB on v7x (64 MiB physical), 64 MiB on v5e/v6e (128 MiB physical).
    return int(min(64 << 20, (physical * 11) // 16))


def _choose_block_rows(rows, d_model, dtype, vmem_cap_bytes,
                       target_tile_bytes=6 << 20,
                       min_split_tile_bytes=1 << 20) -> int:
    """Row-block that is ~target_tile_bytes of input, sublane-aligned, and
    whose double-buffered in/out tiles + f32 intermediates fit in VMEM."""
    itemsize = jnp.dtype(dtype).itemsize
    mult = _sublane_multiple(dtype)
    bytes_per_row = max(1, d_model * itemsize)

    # Target-sized block, sublane aligned.
    br = max(mult, (target_tile_bytes // bytes_per_row) // mult * mult)

    # Clamp so 2x(in) + 2x(out) + ~2 rows of f32 intermediates fit in VMEM.
    per_row_vmem = 4 * bytes_per_row + 2 * d_model * 4
    vmem_budget = max(per_row_vmem * mult, vmem_cap_bytes - (4 << 20))
    max_br_vmem = max(mult, (vmem_budget // per_row_vmem) // mult * mult)
    br = min(br, max_br_vmem)

    if rows <= br:
        # Everything fits in <= 1 target tile. Split ~4 ways (>= 2 blocks per
        # v7x TensorCore for DMA/compute overlap) only if each piece stays a
        # reasonably sized tile; otherwise one full-dim block (always legal,
        # no sublane-multiple constraint).
        quarter = pl.cdiv(pl.cdiv(rows, 4), mult) * mult
        if quarter * bytes_per_row >= min_split_tile_bytes:
            return int(quarter)
        return int(rows)

    # Multiple blocks; if fewer than 4 steps, shrink toward 4 steps but never
    # below the minimum split tile size.
    steps = pl.cdiv(rows, br)
    if steps < 4:
        quarter = pl.cdiv(pl.cdiv(rows, 4), mult) * mult
        if quarter * bytes_per_row >= min_split_tile_bytes:
            br = min(br, quarter)
    return int(br)


def layernorm(x, w, b, *, eps=1e-5, block_rows=None):
    """x: [..., d_model]; w, b: [d_model]. Returns same shape/dtype as x."""
    orig_shape = x.shape
    d_model = orig_shape[-1]
    x2 = x.reshape(-1, d_model)
    rows = x2.shape[0]
    itemsize = jnp.dtype(x.dtype).itemsize

    vmem_cap = _vmem_cap_bytes()
    if block_rows is None:
        block_rows = _choose_block_rows(rows, d_model, x.dtype, vmem_cap)

    # Params pre-cast to compute dtype; index_map is constant so they stay
    # resident in VMEM across all grid steps.
    w2 = w.reshape(1, d_model).astype(jnp.float32)
    b2 = b.reshape(1, d_model).astype(jnp.float32)

    kernel = functools.partial(_layernorm_kernel, eps=eps, d_model=d_model)

    # VMEM budget: in + out tiles double-buffered, f32 intermediates, params.
    tile_bytes = block_rows * d_model * itemsize
    f32_tile_bytes = block_rows * d_model * 4
    vmem_est = 4 * tile_bytes + 2 * f32_tile_bytes + 4 * d_model * 4 + (2 << 20)
    vmem_limit = int(min(max(vmem_est, 8 << 20), vmem_cap))

    cost = pl.CostEstimate(
        flops=7 * rows * d_model,
        transcendentals=rows,
        bytes_accessed=2 * rows * d_model * itemsize + 2 * d_model * 4,
    )

    grid = (pl.cdiv(rows, block_rows),)   # partial final block is masked

    out = pl.pallas_call(
        kernel,
        out_shape=jax.ShapeDtypeStruct((rows, d_model), x.dtype),
        grid_spec=pltpu.PrefetchScalarGridSpec(
            num_scalar_prefetch=0,
            grid=grid,
            in_specs=[
                pl.BlockSpec((block_rows, d_model), lambda i: (i, 0)),
                pl.BlockSpec((1, d_model), lambda i: (0, 0)),
                pl.BlockSpec((1, d_model), lambda i: (0, 0)),
            ],
            out_specs=pl.BlockSpec((block_rows, d_model), lambda i: (i, 0)),
        ),
        compiler_params=pltpu.CompilerParams(
            dimension_semantics=("parallel",),
            vmem_limit_bytes=vmem_limit,
        ),
        cost_estimate=cost,
    )(x2, w2, b2)

    return out.reshape(orig_shape)


def _reference(x, w, b, eps):
    mean = jnp.mean(x, axis=-1, keepdims=True)
    var = jnp.mean((x - mean) ** 2, axis=-1, keepdims=True)
    return (x - mean) / jnp.sqrt(var + eps) * w + b


if __name__ == "__main__":
    # Small shapes consistent with the module: [batch, seq, d_model=768]
    batch, seq, d_model = 2, 8, 768
    eps = 1e-5

    key = jax.random.PRNGKey(0)
    x = jax.random.normal(key, (batch, seq, d_model), dtype=jnp.float32)

    # Parameters as in the PyTorch __init__: w = ones, b = zeros
    w = jnp.ones((d_model,), dtype=jnp.float32)
    b = jnp.zeros((d_model,), dtype=jnp.float32)

    out = jax.block_until_ready(layernorm(x, w, b, eps=eps))
    ref = _reference(x, w, b, eps)
    assert jnp.allclose(out, ref, atol=1e-4, rtol=1e-4), "mismatch vs reference"

    # Non-trivial w/b and non-multiple-of-8 row count (full-dim single block).
    w2 = jax.random.normal(jax.random.PRNGKey(2), (d_model,), dtype=jnp.float32)
    b2 = jax.random.normal(jax.random.PRNGKey(3), (d_model,), dtype=jnp.float32)
    x_odd = jax.random.normal(jax.random.PRNGKey(1), (3, 5, d_model),
                              dtype=jnp.float32)
    out_odd = jax.block_until_ready(layernorm(x_odd, w2, b2, eps=eps))
    ref_odd = _reference(x_odd, w2, b2, eps)
    assert jnp.allclose(out_odd, ref_odd, atol=1e-4, rtol=1e-4), \
        "mismatch vs reference (odd rows path)"

    # Exercise the masked partial-final-block path (rows=15, block_rows=8,
    # grid=2, last block masked — no wrapper padding).
    out_part = jax.block_until_ready(
        layernorm(x_odd, w2, b2, eps=eps, block_rows=8))
    assert jnp.allclose(out_part, ref_odd, atol=1e-4, rtol=1e-4), \
        "mismatch vs reference (masked partial block path)"

    print("KERNEL_OK")
</pallas_src>

<mosaic_0001>
module attributes {stable_mosaic.version = 11 : i64} {
  func.func @_layernorm_kernel(%arg0: i32, %arg1: memref<16x768xf32, #tpu.memory_space<vmem>>, %arg2: memref<1x768xf32, #tpu.memory_space<vmem>>, %arg3: memref<1x768xf32, #tpu.memory_space<vmem>>, %arg4: memref<16x768xf32, #tpu.memory_space<vmem>>) attributes {dimension_semantics = [#tpu.dimension_semantics<parallel>], iteration_bounds = array<i64: 1>, scalar_prefetch = 0 : i64, scratch_operands = 0 : i64, tpu.core_type = #tpu.core_type<tc>, window_params = [{transform_indices = @transform_0, window_bounds = array<i64: 16, 768>}, {pipeline_mode = #tpu.pipeline_mode<synchronous>, transform_indices = @transform_1, window_bounds = array<i64: 1, 768>}, {pipeline_mode = #tpu.pipeline_mode<synchronous>, transform_indices = @transform_2, window_bounds = array<i64: 1, 768>}, {transform_indices = @transform_3, window_bounds = array<i64: 16, 768>}]} {
    %c0 = arith.constant 0 : index
    %c0_0 = arith.constant 0 : index
    %0 = vector.load %arg1[%c0, %c0_0] : memref<16x768xf32, #tpu.memory_space<vmem>>, vector<16x768xf32>
    %cst = arith.constant dense<0.000000e+00> : vector<16xf32>
    %1 = vector.multi_reduction <add>, %0, %cst [1] : vector<16x768xf32> to vector<16xf32>
    %2 = vector.shape_cast %1 : vector<16xf32> to vector<16x1xf32>
    %3 = arith.mulf %0, %0 : vector<16x768xf32>
    %cst_1 = arith.constant dense<0.000000e+00> : vector<16xf32>
    %4 = vector.multi_reduction <add>, %3, %cst_1 [1] : vector<16x768xf32> to vector<16xf32>
    %5 = vector.shape_cast %4 : vector<16xf32> to vector<16x1xf32>
    %cst_2 = arith.constant 0.00130208337 : f32
    %6 = vector.broadcast %cst_2 : f32 to vector<16x1xf32>
    %7 = arith.mulf %2, %6 : vector<16x1xf32>
    %cst_3 = arith.constant 0.00130208337 : f32
    %8 = vector.broadcast %cst_3 : f32 to vector<16x1xf32>
    %9 = arith.mulf %5, %8 : vector<16x1xf32>
    %10 = arith.mulf %7, %7 : vector<16x1xf32>
    %11 = arith.subf %9, %10 : vector<16x1xf32>
    %cst_4 = arith.constant 0.000000e+00 : f32
    %12 = vector.broadcast %cst_4 : f32 to vector<16x1xf32>
    %13 = arith.maximumf %11, %12 : vector<16x1xf32>
    %cst_5 = arith.constant 9.99999974E-6 : f32
    %14 = vector.broadcast %cst_5 : f32 to vector<16x1xf32>
    %15 = arith.addf %13, %14 : vector<16x1xf32>
    %16 = math.rsqrt %15 : vector<16x1xf32>
    %17 = vector.broadcast %7 : vector<16x1xf32> to vector<16x768xf32>
    %18 = arith.subf %0, %17 : vector<16x768xf32>
    %19 = vector.broadcast %16 : vector<16x1xf32> to vector<16x768xf32>
    %20 = arith.mulf %18, %19 : vector<16x768xf32>
    %c0_6 = arith.constant 0 : index
    %c0_7 = arith.constant 0 : index
    %21 = vector.load %arg2[%c0_6, %c0_7] : memref<1x768xf32, #tpu.memory_space<vmem>>, vector<1x768xf32>
    %22 = vector.broadcast %21 : vector<1x768xf32> to vector<16x768xf32>
    %23 = arith.mulf %20, %22 : vector<16x768xf32>
    %c0_8 = arith.constant 0 : index
    %c0_9 = arith.constant 0 : index
    %24 = vector.load %arg3[%c0_8, %c0_9] : memref<1x768xf32, #tpu.memory_space<vmem>>, vector<1x768xf32>
    %25 = vector.broadcast %24 : vector<1x768xf32> to vector<16x768xf32>
    %26 = arith.addf %23, %25 : vector<16x768xf32>
    %c0_10 = arith.constant 0 : index
    %c0_11 = arith.constant 0 : index
    %27 = vector.load %arg4[%c0_10, %c0_11] : memref<16x768xf32, #tpu.memory_space<vmem>>, vector<16x768xf32>
    tpu.vector_store %arg4[%c0_10, %c0_11], %26 {strides = array<i32>} : memref<16x768xf32, #tpu.memory_space<vmem>>, vector<16x768xf32>,
    return
  }
  func.func @transform_0(%arg0: i32) -> (i32, i32) {
    %c0_i32 = arith.constant 0 : i32
    %c0_i32_0 = arith.constant 0 : i32
    return %arg0, %c0_i32 : i32, i32
  }
  func.func @transform_1(%arg0: i32) -> (i32, i32) {
    %c0_i32 = arith.constant 0 : i32
    %c0_i32_0 = arith.constant 0 : i32
    %c0_i32_1 = arith.constant 0 : i32
    return %c0_i32, %c0_i32_0 : i32, i32
  }
  func.func @transform_2(%arg0: i32) -> (i32, i32) {
    %c0_i32 = arith.constant 0 : i32
    %c0_i32_0 = arith.constant 0 : i32
    %c0_i32_1 = arith.constant 0 : i32
    return %c0_i32, %c0_i32_0 : i32, i32
  }
  func.func @transform_3(%arg0: i32) -> (i32, i32) {
    %c0_i32 = arith.constant 0 : i32
    %c0_i32_0 = arith.constant 0 : i32
    return %arg0, %c0_i32 : i32, i32
  }
}

</mosaic_0001>

<llo_original>
// kernel: tpu_custom_call.1
$region0: #{tpu_custom_call.1}
  #allocation0 [shape = 'u32[]', space=smem, size = 0x4, offset = 0x4, fixed_abs, tag = 'smem constant byte address 0x4 - core index']
  #allocation1 [shape = 'u32[144,128]{1,0:T(1,128)}', space=vmem, size = 0x12000, scoped, tag = 'internal scratch']
  %s0 = inlined_call_operand.hbm [shape: f32[16,768], index: 0, kind: input, shape index: {}]
  %s1 = inlined_call_operand.hbm [shape: f32[1,768], index: 1, kind: input, shape index: {}]
  %s2 = inlined_call_operand.vmem [shape: f32[1,768], index: 2, kind: input, shape index: {}]
  %s3 = inlined_call_operand.hbm [shape: f32[16,768], index: 3, kind: output, shape index: {}]
  %s4 = sld [smem:[#allocation0]]
  $region30: #{tpu_custom_call.1} parent=0
    _
  %s6 = ssub.s32 1, %s4
  %s7 = scalar_select 0, %s6, %s4
  $region1: #{tpu_custom_call.1} parent=0
    #allocation2 [shape = 'u8[49152]{0}', space=vmem, size = 0xc000, scoped, tag = 'input window, operand 0, single buffered']
    #allocation3 [shape = 's32[1]{0}', space=sflag, size = 0x4, scoped, tag = 'scoped memory for tpu_custom_call.1']
    #allocation4 [shape = 's32[1]{0}', space=sflag, size = 0x4, scoped, tag = 'scoped memory for tpu_custom_call.1']
    #allocation5 [shape = 'u8[3072]{0}', space=vmem, size = 0xc00, scoped, tag = 'input window, operand 1, single buffered']
    #allocation6 [shape = 's32[1]{0}', space=sflag, size = 0x4, scoped, tag = 'scoped memory for tpu_custom_call.1']
    #allocation7 [shape = 'u8[49152]{0}', space=vmem, size = 0xc000, scoped, tag = 'output window, operand 0, single buffered']
    %8 = vsyncpa [#allocation3], 0
    %9 = vsyncpa [#allocation6], 0
    %10 = vsyncpa [#allocation4], 0
    // Predicated region
    $region2: #{tpu_custom_call.1} parent=1 // pred_check
      _
    $region3: #{tpu_custom_call.1} parent=1 // pred_check_branch
      %12 = sbr.rel (0) target = $region5
    $region4: #{tpu_custom_call.1} parent=1 // pred_region
      %s14 = ssub.s32 1536, 1536
      %15 = vsyncadd [#allocation3], %s14
      %s16 = sshll.u32 [#allocation2], 4
      %s17 = int_to_ptr.vmem [resolvable:$true] %s16
      %22 = dma.hbm_to_vmem [thread:$0]  %s0, 1536, %s17, [#allocation3], 768, 768, 48
    $region5: #{tpu_custom_call.1} parent=1 // pred_fallthru
      _
    // Predicated region
    $region6: #{tpu_custom_call.1} parent=1 // pred_check
      _
    $region7: #{tpu_custom_call.1} parent=1 // pred_check_branch
      %24 = sbr.rel (0) target = $region9
    $region8: #{tpu_custom_call.1} parent=1 // pred_region
      %s26 = ssub.s32 96, 96
      %27 = vsyncadd [#allocation6], %s26
      %s29 = sshll.u32 [#allocation5], 4
      %s30 = int_to_ptr.vmem [resolvable:$true] %s29
      %32 = dma.hbm_to_vmem [thread:$0]  %s1, 96, %s30, [#allocation6]
    $region9: #{tpu_custom_call.1} parent=1 // pred_fallthru
      _
    // Predicated region
    $region10: #{tpu_custom_call.1} parent=1 // pred_check
      _
    $region11: #{tpu_custom_call.1} parent=1 // pred_check_branch
      %34 = sbr.rel (0) target = $region13
    $region12: #{tpu_custom_call.1} parent=1 // pred_region
      _
    $region13: #{tpu_custom_call.1} parent=1 // pred_fallthru
      _
    // Predicated region
    $region14: #{tpu_custom_call.1} parent=1 // pred_check
      _
    $region15: #{tpu_custom_call.1} parent=1 // pred_check_branch
      %36 = sbr.rel (0) target = $region17
    $region16: #{tpu_custom_call.1} parent=1 // pred_region
      %37 = dma.done [#allocation3], 1536
    $region17: #{tpu_custom_call.1} parent=1 // pred_fallthru
      _
    // Predicated region
    $region18: #{tpu_custom_call.1} parent=1 // pred_check
      _
    $region19: #{tpu_custom_call.1} parent=1 // pred_check_branch
      %39 = sbr.rel (0) target = $region21
    $region20: #{tpu_custom_call.1} parent=1 // pred_region
      %40 = dma.done [#allocation6], 96
    $region21: #{tpu_custom_call.1} parent=1 // pred_fallthru
      _
    %v41 = vld [vmem:[#allocation2] sm:$0xff]
    %v42 = vld [vmem:[#allocation2 + $0x8] sm:$0xff]
    %v43 = vld [vmem:[#allocation2 + $0x10] sm:$0xff]
    %v44 = vld [vmem:[#allocation2 + $0x18] sm:$0xff]
    %v45 = vld [vmem:[#allocation2 + $0x20] sm:$0xff]
    %v46 = vld [vmem:[#allocation2 + $0x28] sm:$0xff]
    %v47 = vld [vmem:[#allocation2 + $0x30] sm:$0xff]
    %v48 = vld [vmem:[#allocation2 + $0x38] sm:$0xff]
    %v49 = vld [vmem:[#allocation2 + $0x40] sm:$0xff]
    %v50 = vld [vmem:[#allocation2 + $0x48] sm:$0xff]
    %v51 = vld [vmem:[#allocation2 + $0x50] sm:$0xff]
    %v52 = vld [vmem:[#allocation2 + $0x58] sm:$0xff]
    %v53 = vadd.f32 %v41, %v42
    %v54 = vadd.f32 %v53, %v43
    %v55 = vadd.f32 %v54, %v44
    %v56 = vadd.f32 %v55, %v45
    %v57 = vadd.f32 %v56, %v46
    %58 = vadd.xlane.f32.xlu0 %v57
    %v59 = vpop.xlane.xlu0 %58
    %v60 = vadd.f32 %v47, %v48
    %v61 = vadd.f32 %v60, %v49
    %v62 = vadd.f32 %v61, %v50
    %v63 = vadd.f32 %v62, %v51
    %v64 = vadd.f32 %v63, %v52
    %65 = vadd.xlane.f32.xlu0 %v64
    %v66 = vpop.xlane.xlu0 %65
    %v67 = vmul.f32 %v41, %v41
    %v68 = vmul.f32 %v42, %v42
    %v69 = vmul.f32 %v43, %v43
    %v70 = vmul.f32 %v44, %v44
    %v71 = vmul.f32 %v45, %v45
    %v72 = vmul.f32 %v46, %v46
    %v73 = vmul.f32 %v47, %v47
    %v74 = vmul.f32 %v48, %v48
    %v75 = vmul.f32 %v49, %v49
    %v76 = vmul.f32 %v50, %v50
    %v77 = vmul.f32 %v51, %v51
    %v78 = vmul.f32 %v52, %v52
    %v79 = vadd.f32 %v67, %v68
    %v80 = vadd.f32 %v79, %v69
    %v81 = vadd.f32 %v80, %v70
    %v82 = vadd.f32 %v81, %v71
    %v83 = vadd.f32 %v82, %v72
    %84 = vadd.xlane.f32.xlu0 %v83
    %v85 = vpop.xlane.xlu0 %84
    %v86 = vadd.f32 %v73, %v74
    %v87 = vadd.f32 %v86, %v75
    %v88 = vadd.f32 %v87, %v76
    %v89 = vadd.f32 %v88, %v77
    %v90 = vadd.f32 %v89, %v78
    %91 = vadd.xlane.f32.xlu0 %v90
    %v92 = vpop.xlane.xlu0 %91
    %v93 = vmul.f32 %v59, 0.0013020834
    %v94 = vmul.f32 %v66, 0.0013020834
    %v95 = vmul.f32 %v85, 0.0013020834
    %v96 = vmul.f32 %v92, 0.0013020834
    %v97 = vmul.f32 %v93, %v93
    %v98 = vmul.f32 %v94, %v94
    %v99 = vsub.f32 %v95, %v97
    %v100 = vsub.f32 %v96, %v98
    %v101 = vmax.f32 %v99, 0.0
    %v102 = vmax.f32 %v100, 0.0
    %v103 = vadd.f32 %v101, 1e-05
    %v104 = vadd.f32 %v102, 1e-05
    %v105 = vrsqrt.pop %v103
    %v106 = vrsqrt.pop %v104
    %v107 = vsub.f32 %v41, %v93
    %v108 = vsub.f32 %v42, %v93
    %v109 = vsub.f32 %v43, %v93
    %v110 = vsub.f32 %v44, %v93
    %v111 = vsub.f32 %v45, %v93
    %v112 = vsub.f32 %v46, %v93
    %v113 = vsub.f32 %v47, %v94
    %v114 = vsub.f32 %v48, %v94
    %v115 = vsub.f32 %v49, %v94
    %v116 = vsub.f32 %v50, %v94
    %v117 = vsub.f32 %v51, %v94
    %v118 = vsub.f32 %v52, %v94
    %v119 = vmul.f32 %v107, %v105
    %v120 = vmul.f32 %v108, %v105
    %v121 = vmul.f32 %v109, %v105
    %v122 = vmul.f32 %v110, %v105
    %v123 = vmul.f32 %v111, %v105
    %v124 = vmul.f32 %v112, %v105
    %v125 = vmul.f32 %v113, %v106
    %v126 = vmul.f32 %v114, %v106
    %v127 = vmul.f32 %v115, %v106
    %v128 = vmul.f32 %v116, %v106
    %v129 = vmul.f32 %v117, %v106
    %v130 = vmul.f32 %v118, %v106
    %v131 = vld [vmem:[#allocation5] sm:$0x3f]
    %v133 = vlaneseq
    %v134 = vshrl.u32 %v133, 7
    %v135 = vsub.s32 0, %v134
    %v136 = vrot.slane %v131, %v135
    %v137 = vlaneseq
    %v138 = vshrl.u32 %v137, 7
    %v139 = vsub.s32 1, %v138
    %v140 = vrot.slane %v131, %v139
    %v141 = vlaneseq
    %v142 = vshrl.u32 %v141, 7
    %v143 = vsub.s32 2, %v142
    %v144 = vrot.slane %v131, %v143
    %v145 = vlaneseq
    %v146 = vshrl.u32 %v145, 7
    %v147 = vsub.s32 3, %v146
    %v148 = vrot.slane %v131, %v147
    %v149 = vlaneseq
    %v150 = vshrl.u32 %v149, 7
    %v151 = vsub.s32 4, %v150
    %v152 = vrot.slane %v131, %v151
    %v153 = vlaneseq
    %v154 = vshrl.u32 %v153, 7
    %v155 = vsub.s32 5, %v154
    %v156 = vrot.slane %v131, %v155
    %v163 = vmul.f32 %v119, %v136
    %v164 = vmul.f32 %v120, %v140
    %v165 = vmul.f32 %v121, %v144
    %v166 = vmul.f32 %v122, %v148
    %v167 = vmul.f32 %v123, %v152
    %v168 = vmul.f32 %v124, %v156
    %v169 = vmul.f32 %v125, %v136
    %v170 = vmul.f32 %v126, %v140
    %v171 = vmul.f32 %v127, %v144
    %v172 = vmul.f32 %v128, %v148
    %v173 = vmul.f32 %v129, %v152
    %v174 = vmul.f32 %v130, %v156
    %v175 = vld [vmem:[%s2] sm:$0x3f]
    %v177 = vlaneseq
    %v178 = vshrl.u32 %v177, 7
    %v179 = vsub.s32 0, %v178
    %v180 = vrot.slane %v175, %v179
    %v181 = vlaneseq
    %v182 = vshrl.u32 %v181, 7
    %v183 = vsub.s32 1, %v182
    %v184 = vrot.slane %v175, %v183
    %v185 = vlaneseq
    %v186 = vshrl.u32 %v185, 7
    %v187 = vsub.s32 2, %v186
    %v188 = vrot.slane %v175, %v187
    %v189 = vlaneseq
    %v190 = vshrl.u32 %v189, 7
    %v191 = vsub.s32 3, %v190
    %v192 = vrot.slane %v175, %v191
    %v193 = vlaneseq
    %v194 = vshrl.u32 %v193, 7
    %v195 = vsub.s32 4, %v194
    %v196 = vrot.slane %v175, %v195
    %v197 = vlaneseq
    %v198 = vshrl.u32 %v197, 7
    %v199 = vsub.s32 5, %v198
    %v200 = vrot.slane %v175, %v199
    %v207 = vadd.f32 %v163, %v180
    %v208 = vadd.f32 %v164, %v184
    %v209 = vadd.f32 %v165, %v188
    %v210 = vadd.f32 %v166, %v192
    %v211 = vadd.f32 %v167, %v196
    %v212 = vadd.f32 %v168, %v200
    %v213 = vadd.f32 %v169, %v180
    %v214 = vadd.f32 %v170, %v184
    %v215 = vadd.f32 %v171, %v188
    %v216 = vadd.f32 %v172, %v192
    %v217 = vadd.f32 %v173, %v196
    %v218 = vadd.f32 %v174, %v200
    %219 = vst [vmem:[#allocation7] sm:$0xff] %v207
    %220 = vst [vmem:[#allocation7 + $0x8] sm:$0xff] %v208
    %221 = vst [vmem:[#allocation7 + $0x10] sm:$0xff] %v209
    %222 = vst [vmem:[#allocation7 + $0x18] sm:$0xff] %v210
    %223 = vst [vmem:[#allocation7 + $0x20] sm:$0xff] %v211
    %224 = vst [vmem:[#allocation7 + $0x28] sm:$0xff] %v212
    %225 = vst [vmem:[#allocation7 + $0x30] sm:$0xff] %v213
    %226 = vst [vmem:[#allocation7 + $0x38] sm:$0xff] %v214
    %227 = vst [vmem:[#allocation7 + $0x40] sm:$0xff] %v215
    %228 = vst [vmem:[#allocation7 + $0x48] sm:$0xff] %v216
    %229 = vst [vmem:[#allocation7 + $0x50] sm:$0xff] %v217
    %230 = vst [vmem:[#allocation7 + $0x58] sm:$0xff] %v218
    // Predicated region
    $region22: #{tpu_custom_call.1} parent=1 // pred_check
      _
    $region23: #{tpu_custom_call.1} parent=1 // pred_check_branch
      %232 = sbr.rel (0) target = $region25
    $region24: #{tpu_custom_call.1} parent=1 // pred_region
      %s234 = ssub.s32 1536, 1536
      %235 = vsyncadd [#allocation4], %s234
      %s236 = sshll.u32 [#allocation7], 4
      %s237 = int_to_ptr.vmem [resolvable:$true] %s236
      %242 = dma.vmem_to_hbm [thread:$0]  %s237, 1536, %s3, [#allocation4], 768, 768, 48
    $region25: #{tpu_custom_call.1} parent=1 // pred_fallthru
      _
    // Predicated region
    $region26: #{tpu_custom_call.1} parent=1 // pred_check
      _
    $region27: #{tpu_custom_call.1} parent=1 // pred_check_branch
      %244 = sbr.rel (0) target = $region29
    $region28: #{tpu_custom_call.1} parent=1 // pred_region
      %245 = dma.done [#allocation4], 1536
    $region29: #{tpu_custom_call.1} parent=1 // pred_fallthru
      _
    %246 = vsyncpa [#allocation3], 1
    %247 = vsyncpa [#allocation6], 1
    %248 = vsyncpa [#allocation4], 1

</llo_original>
